<compile_context>
chip_gen: v5e
topology: v5e:2x2
jax: 0.10.0
libtpu: 0.0.40
codegen_flags: <defaults>
</compile_context>

<pallas_src>
import jax
import jax.numpy as jnp
from jax.experimental import pallas as pl
from jax.experimental.pallas import tpu as pltpu

LANE = 128  # TPU vreg lane width


def make_rnn_kernel(batch_padded, seq, input_dim, hidden_dim, layer_dim, out_pad):
    """Builds a Pallas kernel closed over the static sizes.

    Kernel ref order:
      x_ref (time-major, flattened: (seq * batch_padded, input_dim)),
      (w_ih_t_0, w_hh_t_0, b_0), ..., (w_ih_t_{L-1}, w_hh_t_{L-1}, b_{L-1}),
      fc_w_t_ref (H, out_pad), fc_b_ref (1, out_pad),
      out_ref (batch_padded, out_pad)

    where w_ih_t = W_ih.T (D_l, H), w_hh_t = W_hh.T (H, H), b = b_ih + b_hh (1, H).
    """
    Bp, T, H, L = batch_padded, seq, hidden_dim, layer_dim

    def kernel(x_ref, *refs):
        layer_refs = refs[: 3 * L]
        fc_w_ref = refs[3 * L]
        fc_b_ref = refs[3 * L + 1]
        out_ref = refs[3 * L + 2]

        # Load every layer's (pre-transposed) weights / combined bias once.
        w_ih_t = [layer_refs[3 * l + 0][...] for l in range(L)]  # (D_l, H)
        w_hh_t = [layer_refs[3 * l + 1][...] for l in range(L)]  # (H, H)
        bias = [layer_refs[3 * l + 2][...] for l in range(L)]    # (1, H)

        # Layer 0 input projection for ALL timesteps: one batched MXU pass.
        xp0 = (
            jnp.dot(x_ref[...], w_ih_t[0], preferred_element_type=jnp.float32)
            + bias[0]
        )  # (T*Bp, H), rows t*Bp..t*Bp+Bp are timestep t (sublane-aligned)

        # Wavefront-interleaved recurrence: at wavefront step s, layer l works
        # on timestep t = s - l, so up to L independent serial chains are in
        # flight inside the same unrolled region.
        h = [None] * L
        for s in range(T + L - 1):
            prev = list(h)  # values as of the previous wavefront step
            for l in range(L):
                t = s - l
                if t < 0 or t >= T:
                    continue
                if l == 0:
                    pre = xp0[t * Bp:(t + 1) * Bp, :]  # static, sublane-aligned slice
                else:
                    # prev[l-1] == layer (l-1)'s hidden at timestep t.
                    pre = (
                        jnp.dot(prev[l - 1], w_ih_t[l], preferred_element_type=jnp.float32)
                        + bias[l]
                    )
                if t > 0:
                    # h_{-1} == 0  ->  skip the recurrent dot at t == 0.
                    pre = pre + jnp.dot(
                        prev[l], w_hh_t[l], preferred_element_type=jnp.float32
                    )
                h[l] = jnp.tanh(pre)

        # fc on the last-timestep hidden of the top layer; output is padded to a
        # full 128-lane width so the store is an unmasked vst.
        out_ref[...] = (
            jnp.dot(h[L - 1], fc_w_ref[...], preferred_element_type=jnp.float32)
            + fc_b_ref[...]
        ).astype(out_ref.dtype)

    return kernel


def prepare_params(params, *, hidden_dim, output_dim):
    """One-time layout transform (hoisted out of the per-call forward path):
    transpose weights, combine the two RNN biases, lane-pad the fc weights."""
    layers = []
    for (w_ih, w_hh, b_ih, b_hh) in params["layers"]:
        layers.append((w_ih.T, w_hh.T, (b_ih + b_hh).reshape(1, hidden_dim)))
    o_pad = ((output_dim + LANE - 1) // LANE) * LANE
    fc_w_t = (
        jnp.zeros((hidden_dim, o_pad), jnp.float32)
        .at[:, :output_dim]
        .set(params["fc_w"].T)
    )
    fc_b = (
        jnp.zeros((1, o_pad), jnp.float32)
        .at[:, :output_dim]
        .set(params["fc_b"].reshape(1, output_dim))
    )
    return {"layers": layers, "fc_w_t": fc_w_t, "fc_b": fc_b}


def rnn_forward(x, kparams, *, hidden_dim, layer_dim, output_dim):
    """x: (batch, seq, input_dim) batch_first; kparams from prepare_params()."""
    batch, seq, input_dim = x.shape
    Bp = ((batch + 7) // 8) * 8  # pad batch to a sublane multiple

    # Time-major + batch padding + flatten: (B,T,D) -> (T,B,D) -> (T,Bp,D) -> (T*Bp,D)
    x_tm = jnp.transpose(x, (1, 0, 2))
    if Bp != batch:
        x_tm = jnp.pad(x_tm, ((0, 0), (0, Bp - batch), (0, 0)))
    x_flat = x_tm.reshape(seq * Bp, input_dim)

    flat_inputs = [x_flat]
    for (w_ih_t, w_hh_t, b) in kparams["layers"]:
        flat_inputs += [w_ih_t, w_hh_t, b]
    flat_inputs += [kparams["fc_w_t"], kparams["fc_b"]]

    o_pad = kparams["fc_w_t"].shape[1]
    kernel = make_rnn_kernel(Bp, seq, input_dim, hidden_dim, layer_dim, o_pad)

    # Everything is tiny (<100 KiB) -> whole-array blocks resident in VMEM, no grid.
    vmem_spec = pl.BlockSpec(memory_space=pltpu.MemorySpace.VMEM)

    out_padded = pl.pallas_call(
        kernel,
        out_shape=jax.ShapeDtypeStruct((Bp, o_pad), jnp.float32),
        in_specs=[vmem_spec] * len(flat_inputs),
        out_specs=vmem_spec,
    )(*flat_inputs)

    return out_padded[:batch, :output_dim]


def init_params(key, input_dim, hidden_dim, layer_dim, output_dim):
    """Deterministic init, mirroring PyTorch's U(-1/sqrt(H), 1/sqrt(H)) ranges
    (PyTorch weight layout; used by the pure-JAX reference)."""
    params = {"layers": []}
    k = 1.0 / jnp.sqrt(hidden_dim)
    for l in range(layer_dim):
        in_features = input_dim if l == 0 else hidden_dim
        key, k1, k2, k3, k4 = jax.random.split(key, 5)
        w_ih = jax.random.uniform(k1, (hidden_dim, in_features), jnp.float32, -k, k)
        w_hh = jax.random.uniform(k2, (hidden_dim, hidden_dim), jnp.float32, -k, k)
        b_ih = jax.random.uniform(k3, (1, hidden_dim), jnp.float32, -k, k)
        b_hh = jax.random.uniform(k4, (1, hidden_dim), jnp.float32, -k, k)
        params["layers"].append((w_ih, w_hh, b_ih, b_hh))
    key, k1, k2 = jax.random.split(key, 3)
    params["fc_w"] = jax.random.uniform(k1, (output_dim, hidden_dim), jnp.float32, -k, k)
    params["fc_b"] = jax.random.uniform(k2, (1, output_dim), jnp.float32, -k, k)
    return params


def rnn_reference(x, params):
    """Pure-JAX reference (PyTorch-layout weights) for correctness checking."""
    batch = x.shape[0]
    seq = x.shape[1]
    seq_inputs = [x[:, t, :] for t in range(seq)]
    h_last = None
    for (w_ih, w_hh, b_ih, b_hh) in params["layers"]:
        h = jnp.zeros((batch, w_hh.shape[0]), jnp.float32)
        outs = []
        for t in range(seq):
            h = jnp.tanh(seq_inputs[t] @ w_ih.T + b_ih + h @ w_hh.T + b_hh)
            outs.append(h)
        seq_inputs = outs
        h_last = h
    return h_last @ params["fc_w"].T + params["fc_b"]


if __name__ == "__main__":
    # Small shapes consistent with the module's forward.
    batch, seq, input_dim, hidden_dim, layer_dim, output_dim = 2, 8, 16, 32, 2, 4

    key = jax.random.PRNGKey(0)
    key, xkey = jax.random.split(key)
    x = jax.random.normal(xkey, (batch, seq, input_dim), dtype=jnp.float32)

    params = init_params(key, input_dim, hidden_dim, layer_dim, output_dim)
    # Layout plumbing (transposes, bias combine, fc lane-padding) hoisted out of
    # the per-call path: done once here.
    kparams = prepare_params(params, hidden_dim=hidden_dim, output_dim=output_dim)

    fwd = jax.jit(
        lambda xx, pp: rnn_forward(
            xx, pp, hidden_dim=hidden_dim, layer_dim=layer_dim, output_dim=output_dim
        )
    )

    out = fwd(x, kparams)
    out = jax.block_until_ready(out)

    ref = rnn_reference(x, params)
    assert out.shape == (batch, output_dim)
    assert jnp.allclose(out, ref, atol=1e-5, rtol=1e-5), (out, ref)

    print("KERNEL_OK")
</pallas_src>

<mosaic_0001>
module attributes {stable_mosaic.version = 11 : i64} {
  func.func @kernel(%arg0: memref<64x16xf32, #tpu.memory_space<vmem>>, %arg1: memref<16x32xf32, #tpu.memory_space<vmem>>, %arg2: memref<32x32xf32, #tpu.memory_space<vmem>>, %arg3: memref<1x32xf32, #tpu.memory_space<vmem>>, %arg4: memref<32x32xf32, #tpu.memory_space<vmem>>, %arg5: memref<32x32xf32, #tpu.memory_space<vmem>>, %arg6: memref<1x32xf32, #tpu.memory_space<vmem>>, %arg7: memref<32x128xf32, #tpu.memory_space<vmem>>, %arg8: memref<1x128xf32, #tpu.memory_space<vmem>>, %arg9: memref<8x128xf32, #tpu.memory_space<vmem>>) attributes {dimension_semantics = [], scalar_prefetch = 0 : i64, scratch_operands = 0 : i64, tpu.core_type = #tpu.core_type<tc>} {
    %c0 = arith.constant 0 : index
    %c0_0 = arith.constant 0 : index
    %0 = vector.load %arg1[%c0, %c0_0] : memref<16x32xf32, #tpu.memory_space<vmem>>, vector<16x32xf32>
    %c0_1 = arith.constant 0 : index
    %c0_2 = arith.constant 0 : index
    %1 = vector.load %arg4[%c0_1, %c0_2] : memref<32x32xf32, #tpu.memory_space<vmem>>, vector<32x32xf32>
    %c0_3 = arith.constant 0 : index
    %c0_4 = arith.constant 0 : index
    %2 = vector.load %arg2[%c0_3, %c0_4] : memref<32x32xf32, #tpu.memory_space<vmem>>, vector<32x32xf32>
    %c0_5 = arith.constant 0 : index
    %c0_6 = arith.constant 0 : index
    %3 = vector.load %arg5[%c0_5, %c0_6] : memref<32x32xf32, #tpu.memory_space<vmem>>, vector<32x32xf32>
    %c0_7 = arith.constant 0 : index
    %c0_8 = arith.constant 0 : index
    %4 = vector.load %arg3[%c0_7, %c0_8] : memref<1x32xf32, #tpu.memory_space<vmem>>, vector<1x32xf32>
    %c0_9 = arith.constant 0 : index
    %c0_10 = arith.constant 0 : index
    %5 = vector.load %arg6[%c0_9, %c0_10] : memref<1x32xf32, #tpu.memory_space<vmem>>, vector<1x32xf32>
    %c0_11 = arith.constant 0 : index
    %c0_12 = arith.constant 0 : index
    %6 = vector.load %arg0[%c0_11, %c0_12] : memref<64x16xf32, #tpu.memory_space<vmem>>, vector<64x16xf32>
    %cst = arith.constant dense<0.000000e+00> : vector<64x32xf32>
    %7 = tpu.matmul %6, %0, %cst {dimension_numbers = #tpu.dot_dimension_numbers<[1], [0], [0], [1], [0, 0, 1, 1], [], []>} : vector<64x16xf32>, vector<16x32xf32>, vector<64x32xf32> -> vector<64x32xf32>
    %8 = vector.broadcast %4 : vector<1x32xf32> to vector<64x32xf32>
    %9 = arith.addf %7, %8 : vector<64x32xf32>
    %10 = vector.extract_strided_slice %9 {offsets = [0, 0], sizes = [8, 32], strides = [1, 1]} : vector<64x32xf32> to vector<8x32xf32>
    %11 = math.tanh %10 : vector<8x32xf32>
    %12 = vector.extract_strided_slice %9 {offsets = [8, 0], sizes = [8, 32], strides = [1, 1]} : vector<64x32xf32> to vector<8x32xf32>
    %cst_13 = arith.constant dense<0.000000e+00> : vector<8x32xf32>
    %13 = tpu.matmul %11, %2, %cst_13 {dimension_numbers = #tpu.dot_dimension_numbers<[1], [0], [0], [1], [0, 0, 1, 1], [], []>} : vector<8x32xf32>, vector<32x32xf32>, vector<8x32xf32> -> vector<8x32xf32>
    %14 = arith.addf %12, %13 : vector<8x32xf32>
    %15 = math.tanh %14 : vector<8x32xf32>
    %cst_14 = arith.constant dense<0.000000e+00> : vector<8x32xf32>
    %16 = tpu.matmul %11, %1, %cst_14 {dimension_numbers = #tpu.dot_dimension_numbers<[1], [0], [0], [1], [0, 0, 1, 1], [], []>} : vector<8x32xf32>, vector<32x32xf32>, vector<8x32xf32> -> vector<8x32xf32>
    %17 = vector.broadcast %5 : vector<1x32xf32> to vector<8x32xf32>
    %18 = arith.addf %16, %17 : vector<8x32xf32>
    %19 = math.tanh %18 : vector<8x32xf32>
    %20 = vector.extract_strided_slice %9 {offsets = [16, 0], sizes = [8, 32], strides = [1, 1]} : vector<64x32xf32> to vector<8x32xf32>
    %cst_15 = arith.constant dense<0.000000e+00> : vector<8x32xf32>
    %21 = tpu.matmul %15, %2, %cst_15 {dimension_numbers = #tpu.dot_dimension_numbers<[1], [0], [0], [1], [0, 0, 1, 1], [], []>} : vector<8x32xf32>, vector<32x32xf32>, vector<8x32xf32> -> vector<8x32xf32>
    %22 = arith.addf %20, %21 : vector<8x32xf32>
    %23 = math.tanh %22 : vector<8x32xf32>
    %cst_16 = arith.constant dense<0.000000e+00> : vector<8x32xf32>
    %24 = tpu.matmul %15, %1, %cst_16 {dimension_numbers = #tpu.dot_dimension_numbers<[1], [0], [0], [1], [0, 0, 1, 1], [], []>} : vector<8x32xf32>, vector<32x32xf32>, vector<8x32xf32> -> vector<8x32xf32>
    %25 = vector.broadcast %5 : vector<1x32xf32> to vector<8x32xf32>
    %26 = arith.addf %24, %25 : vector<8x32xf32>
    %cst_17 = arith.constant dense<0.000000e+00> : vector<8x32xf32>
    %27 = tpu.matmul %19, %3, %cst_17 {dimension_numbers = #tpu.dot_dimension_numbers<[1], [0], [0], [1], [0, 0, 1, 1], [], []>} : vector<8x32xf32>, vector<32x32xf32>, vector<8x32xf32> -> vector<8x32xf32>
    %28 = arith.addf %26, %27 : vector<8x32xf32>
    %29 = math.tanh %28 : vector<8x32xf32>
    %30 = vector.extract_strided_slice %9 {offsets = [24, 0], sizes = [8, 32], strides = [1, 1]} : vector<64x32xf32> to vector<8x32xf32>
    %cst_18 = arith.constant dense<0.000000e+00> : vector<8x32xf32>
    %31 = tpu.matmul %23, %2, %cst_18 {dimension_numbers = #tpu.dot_dimension_numbers<[1], [0], [0], [1], [0, 0, 1, 1], [], []>} : vector<8x32xf32>, vector<32x32xf32>, vector<8x32xf32> -> vector<8x32xf32>
    %32 = arith.addf %30, %31 : vector<8x32xf32>
    %33 = math.tanh %32 : vector<8x32xf32>
    %cst_19 = arith.constant dense<0.000000e+00> : vector<8x32xf32>
    %34 = tpu.matmul %23, %1, %cst_19 {dimension_numbers = #tpu.dot_dimension_numbers<[1], [0], [0], [1], [0, 0, 1, 1], [], []>} : vector<8x32xf32>, vector<32x32xf32>, vector<8x32xf32> -> vector<8x32xf32>
    %35 = vector.broadcast %5 : vector<1x32xf32> to vector<8x32xf32>
    %36 = arith.addf %34, %35 : vector<8x32xf32>
    %cst_20 = arith.constant dense<0.000000e+00> : vector<8x32xf32>
    %37 = tpu.matmul %29, %3, %cst_20 {dimension_numbers = #tpu.dot_dimension_numbers<[1], [0], [0], [1], [0, 0, 1, 1], [], []>} : vector<8x32xf32>, vector<32x32xf32>, vector<8x32xf32> -> vector<8x32xf32>
    %38 = arith.addf %36, %37 : vector<8x32xf32>
    %39 = math.tanh %38 : vector<8x32xf32>
    %40 = vector.extract_strided_slice %9 {offsets = [32, 0], sizes = [8, 32], strides = [1, 1]} : vector<64x32xf32> to vector<8x32xf32>
    %cst_21 = arith.constant dense<0.000000e+00> : vector<8x32xf32>
    %41 = tpu.matmul %33, %2, %cst_21 {dimension_numbers = #tpu.dot_dimension_numbers<[1], [0], [0], [1], [0, 0, 1, 1], [], []>} : vector<8x32xf32>, vector<32x32xf32>, vector<8x32xf32> -> vector<8x32xf32>
    %42 = arith.addf %40, %41 : vector<8x32xf32>
    %43 = math.tanh %42 : vector<8x32xf32>
    %cst_22 = arith.constant dense<0.000000e+00> : vector<8x32xf32>
    %44 = tpu.matmul %33, %1, %cst_22 {dimension_numbers = #tpu.dot_dimension_numbers<[1], [0], [0], [1], [0, 0, 1, 1], [], []>} : vector<8x32xf32>, vector<32x32xf32>, vector<8x32xf32> -> vector<8x32xf32>
    %45 = vector.broadcast %5 : vector<1x32xf32> to vector<8x32xf32>
    %46 = arith.addf %44, %45 : vector<8x32xf32>
    %cst_23 = arith.constant dense<0.000000e+00> : vector<8x32xf32>
    %47 = tpu.matmul %39, %3, %cst_23 {dimension_numbers = #tpu.dot_dimension_numbers<[1], [0], [0], [1], [0, 0, 1, 1], [], []>} : vector<8x32xf32>, vector<32x32xf32>, vector<8x32xf32> -> vector<8x32xf32>
    %48 = arith.addf %46, %47 : vector<8x32xf32>
    %49 = math.tanh %48 : vector<8x32xf32>
    %50 = vector.extract_strided_slice %9 {offsets = [40, 0], sizes = [8, 32], strides = [1, 1]} : vector<64x32xf32> to vector<8x32xf32>
    %cst_24 = arith.constant dense<0.000000e+00> : vector<8x32xf32>
    %51 = tpu.matmul %43, %2, %cst_24 {dimension_numbers = #tpu.dot_dimension_numbers<[1], [0], [0], [1], [0, 0, 1, 1], [], []>} : vector<8x32xf32>, vector<32x32xf32>, vector<8x32xf32> -> vector<8x32xf32>
    %52 = arith.addf %50, %51 : vector<8x32xf32>
    %53 = math.tanh %52 : vector<8x32xf32>
    %cst_25 = arith.constant dense<0.000000e+00> : vector<8x32xf32>
    %54 = tpu.matmul %43, %1, %cst_25 {dimension_numbers = #tpu.dot_dimension_numbers<[1], [0], [0], [1], [0, 0, 1, 1], [], []>} : vector<8x32xf32>, vector<32x32xf32>, vector<8x32xf32> -> vector<8x32xf32>
    %55 = vector.broadcast %5 : vector<1x32xf32> to vector<8x32xf32>
    %56 = arith.addf %54, %55 : vector<8x32xf32>
    %cst_26 = arith.constant dense<0.000000e+00> : vector<8x32xf32>
    %57 = tpu.matmul %49, %3, %cst_26 {dimension_numbers = #tpu.dot_dimension_numbers<[1], [0], [0], [1], [0, 0, 1, 1], [], []>} : vector<8x32xf32>, vector<32x32xf32>, vector<8x32xf32> -> vector<8x32xf32>
    %58 = arith.addf %56, %57 : vector<8x32xf32>
    %59 = math.tanh %58 : vector<8x32xf32>
    %60 = vector.extract_strided_slice %9 {offsets = [48, 0], sizes = [8, 32], strides = [1, 1]} : vector<64x32xf32> to vector<8x32xf32>
    %cst_27 = arith.constant dense<0.000000e+00> : vector<8x32xf32>
    %61 = tpu.matmul %53, %2, %cst_27 {dimension_numbers = #tpu.dot_dimension_numbers<[1], [0], [0], [1], [0, 0, 1, 1], [], []>} : vector<8x32xf32>, vector<32x32xf32>, vector<8x32xf32> -> vector<8x32xf32>
    %62 = arith.addf %60, %61 : vector<8x32xf32>
    %63 = math.tanh %62 : vector<8x32xf32>
    %cst_28 = arith.constant dense<0.000000e+00> : vector<8x32xf32>
    %64 = tpu.matmul %53, %1, %cst_28 {dimension_numbers = #tpu.dot_dimension_numbers<[1], [0], [0], [1], [0, 0, 1, 1], [], []>} : vector<8x32xf32>, vector<32x32xf32>, vector<8x32xf32> -> vector<8x32xf32>
    %65 = vector.broadcast %5 : vector<1x32xf32> to vector<8x32xf32>
    %66 = arith.addf %64, %65 : vector<8x32xf32>
    %cst_29 = arith.constant dense<0.000000e+00> : vector<8x32xf32>
    %67 = tpu.matmul %59, %3, %cst_29 {dimension_numbers = #tpu.dot_dimension_numbers<[1], [0], [0], [1], [0, 0, 1, 1], [], []>} : vector<8x32xf32>, vector<32x32xf32>, vector<8x32xf32> -> vector<8x32xf32>
    %68 = arith.addf %66, %67 : vector<8x32xf32>
    %69 = math.tanh %68 : vector<8x32xf32>
    %70 = vector.extract_strided_slice %9 {offsets = [56, 0], sizes = [8, 32], strides = [1, 1]} : vector<64x32xf32> to vector<8x32xf32>
    %cst_30 = arith.constant dense<0.000000e+00> : vector<8x32xf32>
    %71 = tpu.matmul %63, %2, %cst_30 {dimension_numbers = #tpu.dot_dimension_numbers<[1], [0], [0], [1], [0, 0, 1, 1], [], []>} : vector<8x32xf32>, vector<32x32xf32>, vector<8x32xf32> -> vector<8x32xf32>
    %72 = arith.addf %70, %71 : vector<8x32xf32>
    %73 = math.tanh %72 : vector<8x32xf32>
    %cst_31 = arith.constant dense<0.000000e+00> : vector<8x32xf32>
    %74 = tpu.matmul %63, %1, %cst_31 {dimension_numbers = #tpu.dot_dimension_numbers<[1], [0], [0], [1], [0, 0, 1, 1], [], []>} : vector<8x32xf32>, vector<32x32xf32>, vector<8x32xf32> -> vector<8x32xf32>
    %75 = vector.broadcast %5 : vector<1x32xf32> to vector<8x32xf32>
    %76 = arith.addf %74, %75 : vector<8x32xf32>
    %cst_32 = arith.constant dense<0.000000e+00> : vector<8x32xf32>
    %77 = tpu.matmul %69, %3, %cst_32 {dimension_numbers = #tpu.dot_dimension_numbers<[1], [0], [0], [1], [0, 0, 1, 1], [], []>} : vector<8x32xf32>, vector<32x32xf32>, vector<8x32xf32> -> vector<8x32xf32>
    %78 = arith.addf %76, %77 : vector<8x32xf32>
    %79 = math.tanh %78 : vector<8x32xf32>
    %cst_33 = arith.constant dense<0.000000e+00> : vector<8x32xf32>
    %80 = tpu.matmul %73, %1, %cst_33 {dimension_numbers = #tpu.dot_dimension_numbers<[1], [0], [0], [1], [0, 0, 1, 1], [], []>} : vector<8x32xf32>, vector<32x32xf32>, vector<8x32xf32> -> vector<8x32xf32>
    %81 = vector.broadcast %5 : vector<1x32xf32> to vector<8x32xf32>
    %82 = arith.addf %80, %81 : vector<8x32xf32>
    %cst_34 = arith.constant dense<0.000000e+00> : vector<8x32xf32>
    %83 = tpu.matmul %79, %3, %cst_34 {dimension_numbers = #tpu.dot_dimension_numbers<[1], [0], [0], [1], [0, 0, 1, 1], [], []>} : vector<8x32xf32>, vector<32x32xf32>, vector<8x32xf32> -> vector<8x32xf32>
    %84 = arith.addf %82, %83 : vector<8x32xf32>
    %85 = math.tanh %84 : vector<8x32xf32>
    %c0_35 = arith.constant 0 : index
    %c0_36 = arith.constant 0 : index
    %86 = vector.load %arg7[%c0_35, %c0_36] : memref<32x128xf32, #tpu.memory_space<vmem>>, vector<32x128xf32>
    %cst_37 = arith.constant dense<0.000000e+00> : vector<8x128xf32>
    %87 = tpu.matmul %85, %86, %cst_37 {dimension_numbers = #tpu.dot_dimension_numbers<[1], [0], [0], [1], [0, 0, 1, 1], [], []>} : vector<8x32xf32>, vector<32x128xf32>, vector<8x128xf32> -> vector<8x128xf32>
    %c0_38 = arith.constant 0 : index
    %c0_39 = arith.constant 0 : index
    %88 = vector.load %arg8[%c0_38, %c0_39] : memref<1x128xf32, #tpu.memory_space<vmem>>, vector<1x128xf32>
    %89 = vector.broadcast %88 : vector<1x128xf32> to vector<8x128xf32>
    %90 = arith.addf %87, %89 : vector<8x128xf32>
    %c0_40 = arith.constant 0 : index
    %c0_41 = arith.constant 0 : index
    %91 = vector.load %arg9[%c0_40, %c0_41] : memref<8x128xf32, #tpu.memory_space<vmem>>, vector<8x128xf32>
    tpu.vector_store %arg9[%c0_40, %c0_41], %90 {strides = array<i32>} : memref<8x128xf32, #tpu.memory_space<vmem>>, vector<8x128xf32>,
    return
  }
}

</mosaic_0001>

<llo_original>
// kernel: _lambda_.1
$region0: #{_lambda_.1}
  #allocation0 [shape = 'u32[]', space=smem, size = 0x4, offset = 0x4, fixed_abs, tag = 'smem constant byte address 0x4 - core index']
  #allocation1 [shape = 'u32[72,128]{1,0:T(1,128)}', space=vmem, size = 0x9000, scoped, tag = 'internal scratch']
  %s0 = inlined_call_operand.vmem [shape: f32[64,16], index: 0, kind: input, shape index: {}]
  %s1 = inlined_call_operand.vmem [shape: f32[16,32], index: 1, kind: input, shape index: {}]
  %s2 = inlined_call_operand.vmem [shape: f32[32,32], index: 2, kind: input, shape index: {}]
  %s3 = inlined_call_operand.vmem [shape: f32[1,32], index: 3, kind: input, shape index: {}]
  %s4 = inlined_call_operand.vmem [shape: f32[32,32], index: 4, kind: input, shape index: {}]
  %s5 = inlined_call_operand.vmem [shape: f32[32,32], index: 5, kind: input, shape index: {}]
  %s6 = inlined_call_operand.vmem [shape: f32[1,32], index: 6, kind: input, shape index: {}]
  %s7 = inlined_call_operand.hbm [shape: f32[32,128], index: 7, kind: input, shape index: {}]
  %s8 = inlined_call_operand.hbm [shape: f32[1,128], index: 8, kind: input, shape index: {}]
  %s9 = inlined_call_operand.vmem [shape: f32[8,128], index: 9, kind: output, shape index: {}]
  %s10 = sld [smem:[#allocation0]]
  $region54: #{_lambda_.1} parent=0
    _
  %s12 = ssub.s32 1, %s10
  %s13 = scalar_select 0, %s12, %s10
  $region1: #{_lambda_.1} parent=0
    #allocation2 [shape = 'u8[16384]{0}', space=vmem, size = 0x4000, scoped, tag = 'input window, operand 7, single buffered']
    #allocation3 [shape = 's32[1]{0}', space=sflag, size = 0x4, scoped, tag = 'scoped memory for _lambda_.1']
    #allocation4 [shape = 'u8[512]{0}', space=vmem, size = 0x400, scoped, tag = 'input window, operand 8, single buffered']
    #allocation5 [shape = 's32[1]{0}', space=sflag, size = 0x4, scoped, tag = 'scoped memory for _lambda_.1']
    %14 = vsyncpa [#allocation3], 0
    %15 = vsyncpa [#allocation5], 0
    // Predicated region
    $region2: #{_lambda_.1} parent=1 // pred_check
      _
    $region3: #{_lambda_.1} parent=1 // pred_check_branch
      %17 = sbr.rel (0) target = $region5
    $region4: #{_lambda_.1} parent=1 // pred_region
      _
    $region5: #{_lambda_.1} parent=1 // pred_fallthru
      _
    // Predicated region
    $region6: #{_lambda_.1} parent=1 // pred_check
      _
    $region7: #{_lambda_.1} parent=1 // pred_check_branch
      %19 = sbr.rel (0) target = $region9
    $region8: #{_lambda_.1} parent=1 // pred_region
      _
    $region9: #{_lambda_.1} parent=1 // pred_fallthru
      _
    // Predicated region
    $region10: #{_lambda_.1} parent=1 // pred_check
      _
    $region11: #{_lambda_.1} parent=1 // pred_check_branch
      %21 = sbr.rel (0) target = $region13
    $region12: #{_lambda_.1} parent=1 // pred_region
      _
    $region13: #{_lambda_.1} parent=1 // pred_fallthru
      _
    // Predicated region
    $region14: #{_lambda_.1} parent=1 // pred_check
      _
    $region15: #{_lambda_.1} parent=1 // pred_check_branch
      %23 = sbr.rel (0) target = $region17
    $region16: #{_lambda_.1} parent=1 // pred_region
      _
    $region17: #{_lambda_.1} parent=1 // pred_fallthru
      _
    // Predicated region
    $region18: #{_lambda_.1} parent=1 // pred_check
      _
    $region19: #{_lambda_.1} parent=1 // pred_check_branch
      %25 = sbr.rel (0) target = $region21
    $region20: #{_lambda_.1} parent=1 // pred_region
      _
    $region21: #{_lambda_.1} parent=1 // pred_fallthru
      _
    // Predicated region
    $region22: #{_lambda_.1} parent=1 // pred_check
      _
    $region23: #{_lambda_.1} parent=1 // pred_check_branch
      %27 = sbr.rel (0) target = $region25
    $region24: #{_lambda_.1} parent=1 // pred_region
      _
    $region25: #{_lambda_.1} parent=1 // pred_fallthru
      _
    // Predicated region
    $region26: #{_lambda_.1} parent=1 // pred_check
      _
    $region27: #{_lambda_.1} parent=1 // pred_check_branch
      %29 = sbr.rel (0) target = $region29
    $region28: #{_lambda_.1} parent=1 // pred_region
      _
    $region29: #{_lambda_.1} parent=1 // pred_fallthru
      _
    // Predicated region
    $region30: #{_lambda_.1} parent=1 // pred_check
      _
    $region31: #{_lambda_.1} parent=1 // pred_check_branch
      %31 = sbr.rel (0) target = $region33
    $region32: #{_lambda_.1} parent=1 // pred_region
      %33 = vsyncadd [#allocation3], 0
      %s34 = sshll.u32 %s7, 4
      %s35 = int_to_ptr.hbm [resolvable:$true] %s34
      %s36 = sshll.u32 [#allocation2], 4
      %s37 = int_to_ptr.vmem [resolvable:$true] %s36
      %42 = dma.hbm_to_vmem [thread:$0]  %s35, 512, %s37, [#allocation3], 128, 128, 8
    $region33: #{_lambda_.1} parent=1 // pred_fallthru
      _
    // Predicated region
    $region34: #{_lambda_.1} parent=1 // pred_check
      _
    $region35: #{_lambda_.1} parent=1 // pred_check_branch
      %44 = sbr.rel (0) target = $region37
    $region36: #{_lambda_.1} parent=1 // pred_region
      %46 = vsyncadd [#allocation5], 0
      %s48 = sshll.u32 %s8, 4
      %s49 = int_to_ptr.hbm [resolvable:$true] %s48
      %s50 = sshll.u32 [#allocation4], 4
      %s51 = int_to_ptr.vmem [resolvable:$true] %s50
      %53 = dma.hbm_to_vmem [thread:$0]  %s49, 16, %s51, [#allocation5]
    $region37: #{_lambda_.1} parent=1 // pred_fallthru
      _
    // Predicated region
    $region38: #{_lambda_.1} parent=1 // pred_check
      _
    $region39: #{_lambda_.1} parent=1 // pred_check_branch
      %55 = sbr.rel (0) target = $region41
    $region40: #{_lambda_.1} parent=1 // pred_region
      %57 = dma.done [#allocation3], 512
    $region41: #{_lambda_.1} parent=1 // pred_fallthru
      _
    // Predicated region
    $region42: #{_lambda_.1} parent=1 // pred_check
      _
    $region43: #{_lambda_.1} parent=1 // pred_check_branch
      %59 = sbr.rel (0) target = $region45
    $region44: #{_lambda_.1} parent=1 // pred_region
      %61 = dma.done [#allocation5], 16
    $region45: #{_lambda_.1} parent=1 // pred_fallthru
      _
    %v62 = vld [vmem:[%s1] sm:$0xff]
    %v63 = vld [vmem:[%s1 + $0x8] sm:$0xff]
    %v64 = vld [vmem:[%s4] sm:$0xff]
    %v65 = vld [vmem:[%s4 + $0x8] sm:$0xff]
    %v66 = vld [vmem:[%s4 + $0x10] sm:$0xff]
    %v67 = vld [vmem:[%s4 + $0x18] sm:$0xff]
    %v68 = vld [vmem:[%s2] sm:$0xff]
    %v69 = vld [vmem:[%s2 + $0x8] sm:$0xff]
    %v70 = vld [vmem:[%s2 + $0x10] sm:$0xff]
    %v71 = vld [vmem:[%s2 + $0x18] sm:$0xff]
    %v72 = vld [vmem:[%s5] sm:$0xff]
    %v73 = vld [vmem:[%s5 + $0x8] sm:$0xff]
    %v74 = vld [vmem:[%s5 + $0x10] sm:$0xff]
    %v75 = vld [vmem:[%s5 + $0x18] sm:$0xff]
    %v76 = vld [vmem:[%s3] sm:$0x1]
    %v77 = vld [vmem:[%s6] sm:$0x1]
    %v78 = vld [vmem:[%s0] sm:$0xff]
    %v79 = vld [vmem:[%s0 + $0x8] sm:$0xff]
    %v80 = vld [vmem:[%s0 + $0x10] sm:$0xff]
    %v81 = vld [vmem:[%s0 + $0x18] sm:$0xff]
    %v82 = vld [vmem:[%s0 + $0x20] sm:$0xff]
    %v83 = vld [vmem:[%s0 + $0x28] sm:$0xff]
    %v84 = vld [vmem:[%s0 + $0x30] sm:$0xff]
    %v85 = vld [vmem:[%s0 + $0x38] sm:$0xff]
    %v87 = vperm.slane %v76, 0
    %vm89 = vcmask 130048
    %v91 = vsel %vm89, %v78, 0
    %v94 = vsel %vm89, %v79, 0
    %v97 = vsel %vm89, %v80, 0
    %v100 = vsel %vm89, %v81, 0
    %v103 = vsel %vm89, %v82, 0
    %v106 = vsel %vm89, %v83, 0
    %v109 = vsel %vm89, %v84, 0
    %v112 = vsel %vm89, %v85, 0
    %114 = vmatpush.msra.mxu0 0.0
    %115 = vmatpush.msra.mxu0 0.0
    %116 = vmatpush.msra.mxu0 0.0
    %117 = vmatpush.msra.mxu0 0.0
    %118 = vmatpush.msra.mxu0 0.0
    %119 = vmatpush.msra.mxu0 0.0
    %120 = vmatpush.msra.mxu0 0.0
    %121 = vmatpush.msra.mxu0 0.0
    %122 = vmatpush.msra.mxu0 0.0
    %123 = vmatpush.msra.mxu0 0.0
    %124 = vmatpush.msra.mxu0 0.0
    %125 = vmatpush.msra.mxu0 0.0
    %126 = vmatpush.msra.mxu0 0.0
    %127 = vmatpush.msra.mxu0 0.0
    %128 = vmatpush.msra.mxu0 %v63
    %129 = vmatpush.msra.mxu0 %v62
    %130 = vmatmul.f32.gmra.mxu0 %v91
    %v131 = vpop.f32.mrf.mxu0
    %v132 = vadd.f32 %v87, %v131
    %133 = vmatmul.f32.gmra.mxu0 %v94
    %v134 = vpop.f32.mrf.mxu0
    %v135 = vadd.f32 %v87, %v134
    %136 = vmatmul.f32.gmra.mxu0 %v97
    %v137 = vpop.f32.mrf.mxu0
    %v138 = vadd.f32 %v87, %v137
    %139 = vmatmul.f32.gmra.mxu0 %v100
    %v140 = vpop.f32.mrf.mxu0
    %v141 = vadd.f32 %v87, %v140
    %142 = vmatmul.f32.gmra.mxu0 %v103
    %v143 = vpop.f32.mrf.mxu0
    %v144 = vadd.f32 %v87, %v143
    %145 = vmatmul.f32.gmra.mxu0 %v106
    %v146 = vpop.f32.mrf.mxu0
    %v147 = vadd.f32 %v87, %v146
    %148 = vmatmul.f32.gmra.mxu0 %v109
    %v149 = vpop.f32.mrf.mxu0
    %v150 = vadd.f32 %v87, %v149
    %151 = vmatmul.f32.gmra.mxu0 %v112
    %v152 = vpop.f32.mrf.mxu0
    %v153 = vadd.f32 %v87, %v152
    %154 = vdwg.mxu0
    %v155 = vtanh.pop %v132
    %vm156 = vcmask 261120
    %v158 = vsel %vm156, %v155, 0
    %160 = vmatpush.msra.mxu0 0.0
    %161 = vmatpush.msra.mxu0 0.0
    %162 = vmatpush.msra.mxu0 0.0
    %163 = vmatpush.msra.mxu0 0.0
    %164 = vmatpush.msra.mxu0 0.0
    %165 = vmatpush.msra.mxu0 0.0
    %166 = vmatpush.msra.mxu0 0.0
    %167 = vmatpush.msra.mxu0 0.0
    %168 = vmatpush.msra.mxu0 0.0
    %169 = vmatpush.msra.mxu0 0.0
    %170 = vmatpush.msra.mxu0 0.0
    %171 = vmatpush.msra.mxu0 0.0
    %172 = vmatpush.msra.mxu0 %v71
    %173 = vmatpush.msra.mxu0 %v70
    %174 = vmatpush.msra.mxu0 %v69
    %175 = vmatpush.msra.mxu0 %v68
    %176 = vmatmul.f32.gmra.mxu0 %v158
    %v177 = vpop.f32.mrf.mxu0
    %v178 = vadd.f32 0.0, %v177
    %179 = vdwg.mxu0
    %v180 = vadd.f32 %v135, %v178
    %v181 = vtanh.pop %v180
    %v183 = vperm.slane %v77, 0
    %185 = vmatpush.msra.mxu0 0.0
    %186 = vmatpush.msra.mxu0 0.0
    %187 = vmatpush.msra.mxu0 0.0
    %188 = vmatpush.msra.mxu0 0.0
    %189 = vmatpush.msra.mxu0 0.0
    %190 = vmatpush.msra.mxu0 0.0
    %191 = vmatpush.msra.mxu0 0.0
    %192 = vmatpush.msra.mxu0 0.0
    %193 = vmatpush.msra.mxu0 0.0
    %194 = vmatpush.msra.mxu0 0.0
    %195 = vmatpush.msra.mxu0 0.0
    %196 = vmatpush.msra.mxu0 0.0
    %197 = vmatpush.msra.mxu0 %v67
    %198 = vmatpush.msra.mxu0 %v66
    %199 = vmatpush.msra.mxu0 %v65
    %200 = vmatpush.msra.mxu0 %v64
    %201 = vmatmul.f32.gmra.mxu0 %v158
    %v202 = vpop.f32.mrf.mxu0
    %v203 = vadd.f32 %v183, %v202
    %204 = vdwg.mxu0
    %v205 = vtanh.pop %v203
    %v207 = vsel %vm156, %v181, 0
    %209 = vmatpush.msra.mxu0 0.0
    %210 = vmatpush.msra.mxu0 0.0
    %211 = vmatpush.msra.mxu0 0.0
    %212 = vmatpush.msra.mxu0 0.0
    %213 = vmatpush.msra.mxu0 0.0
    %214 = vmatpush.msra.mxu0 0.0
    %215 = vmatpush.msra.mxu0 0.0
    %216 = vmatpush.msra.mxu0 0.0
    %217 = vmatpush.msra.mxu0 0.0
    %218 = vmatpush.msra.mxu0 0.0
    %219 = vmatpush.msra.mxu0 0.0
    %220 = vmatpush.msra.mxu0 0.0
    %221 = vmatpush.msra.mxu0 %v71
    %222 = vmatpush.msra.mxu0 %v70
    %223 = vmatpush.msra.mxu0 %v69
    %224 = vmatpush.msra.mxu0 %v68
    %225 = vmatmul.f32.gmra.mxu0 %v207
    %v226 = vpop.f32.mrf.mxu0
    %v227 = vadd.f32 0.0, %v226
    %228 = vdwg.mxu0
    %v229 = vadd.f32 %v138, %v227
    %v230 = vtanh.pop %v229
    %231 = vmatpush.msra.mxu0 0.0
    %232 = vmatpush.msra.mxu0 0.0
    %233 = vmatpush.msra.mxu0 0.0
    %234 = vmatpush.msra.mxu0 0.0
    %235 = vmatpush.msra.mxu0 0.0
    %236 = vmatpush.msra.mxu0 0.0
    %237 = vmatpush.msra.mxu0 0.0
    %238 = vmatpush.msra.mxu0 0.0
    %239 = vmatpush.msra.mxu0 0.0
    %240 = vmatpush.msra.mxu0 0.0
    %241 = vmatpush.msra.mxu0 0.0
    %242 = vmatpush.msra.mxu0 0.0
    %243 = vmatpush.msra.mxu0 %v67
    %244 = vmatpush.msra.mxu0 %v66
    %245 = vmatpush.msra.mxu0 %v65
    %246 = vmatpush.msra.mxu0 %v64
    %247 = vmatmul.f32.gmra.mxu0 %v207
    %v248 = vpop.f32.mrf.mxu0
    %v249 = vadd.f32 %v183, %v248
    %250 = vdwg.mxu0
    %v252 = vsel %vm156, %v205, 0
    %254 = vmatpush.msra.mxu0 0.0
    %255 = vmatpush.msra.mxu0 0.0
    %256 = vmatpush.msra.mxu0 0.0
    %257 = vmatpush.msra.mxu0 0.0
    %258 = vmatpush.msra.mxu0 0.0
    %259 = vmatpush.msra.mxu0 0.0
    %260 = vmatpush.msra.mxu0 0.0
    %261 = vmatpush.msra.mxu0 0.0
    %262 = vmatpush.msra.mxu0 0.0
    %263 = vmatpush.msra.mxu0 0.0
    %264 = vmatpush.msra.mxu0 0.0
    %265 = vmatpush.msra.mxu0 0.0
    %266 = vmatpush.msra.mxu0 %v75
    %267 = vmatpush.msra.mxu0 %v74
    %268 = vmatpush.msra.mxu0 %v73
    %269 = vmatpush.msra.mxu0 %v72
    %270 = vmatmul.f32.gmra.mxu0 %v252
    %v271 = vpop.f32.mrf.mxu0
    %v272 = vadd.f32 0.0, %v271
    %273 = vdwg.mxu0
    %v274 = vadd.f32 %v249, %v272
    %v275 = vtanh.pop %v274
    %v277 = vsel %vm156, %v230, 0
    %279 = vmatpush.msra.mxu0 0.0
    %280 = vmatpush.msra.mxu0 0.0
    %281 = vmatpush.msra.mxu0 0.0
    %282 = vmatpush.msra.mxu0 0.0
    %283 = vmatpush.msra.mxu0 0.0
    %284 = vmatpush.msra.mxu0 0.0
    %285 = vmatpush.msra.mxu0 0.0
    %286 = vmatpush.msra.mxu0 0.0
    %287 = vmatpush.msra.mxu0 0.0
    %288 = vmatpush.msra.mxu0 0.0
    %289 = vmatpush.msra.mxu0 0.0
    %290 = vmatpush.msra.mxu0 0.0
    %291 = vmatpush.msra.mxu0 %v71
    %292 = vmatpush.msra.mxu0 %v70
    %293 = vmatpush.msra.mxu0 %v69
    %294 = vmatpush.msra.mxu0 %v68
    %295 = vmatmul.f32.gmra.mxu0 %v277
    %v296 = vpop.f32.mrf.mxu0
    %v297 = vadd.f32 0.0, %v296
    %298 = vdwg.mxu0
    %v299 = vadd.f32 %v141, %v297
    %v300 = vtanh.pop %v299
    %301 = vmatpush.msra.mxu0 0.0
    %302 = vmatpush.msra.mxu0 0.0
    %303 = vmatpush.msra.mxu0 0.0
    %304 = vmatpush.msra.mxu0 0.0
    %305 = vmatpush.msra.mxu0 0.0
    %306 = vmatpush.msra.mxu0 0.0
    %307 = vmatpush.msra.mxu0 0.0
    %308 = vmatpush.msra.mxu0 0.0
    %309 = vmatpush.msra.mxu0 0.0
    %310 = vmatpush.msra.mxu0 0.0
    %311 = vmatpush.msra.mxu0 0.0
    %312 = vmatpush.msra.mxu0 0.0
    %313 = vmatpush.msra.mxu0 %v67
    %314 = vmatpush.msra.mxu0 %v66
    %315 = vmatpush.msra.mxu0 %v65
    %316 = vmatpush.msra.mxu0 %v64
    %317 = vmatmul.f32.gmra.mxu0 %v277
    %v318 = vpop.f32.mrf.mxu0
    %v319 = vadd.f32 %v183, %v318
    %320 = vdwg.mxu0
    %v322 = vsel %vm156, %v275, 0
    %324 = vmatpush.msra.mxu0 0.0
    %325 = vmatpush.msra.mxu0 0.0
    %326 = vmatpush.msra.mxu0 0.0
    %327 = vmatpush.msra.mxu0 0.0
    %328 = vmatpush.msra.mxu0 0.0
    %329 = vmatpush.msra.mxu0 0.0
    %330 = vmatpush.msra.mxu0 0.0
    %331 = vmatpush.msra.mxu0 0.0
    %332 = vmatpush.msra.mxu0 0.0
    %333 = vmatpush.msra.mxu0 0.0
    %334 = vmatpush.msra.mxu0 0.0
    %335 = vmatpush.msra.mxu0 0.0
    %336 = vmatpush.msra.mxu0 %v75
    %337 = vmatpush.msra.mxu0 %v74
    %338 = vmatpush.msra.mxu0 %v73
    %339 = vmatpush.msra.mxu0 %v72
    %340 = vmatmul.f32.gmra.mxu0 %v322
    %v341 = vpop.f32.mrf.mxu0
    %v342 = vadd.f32 0.0, %v341
    %343 = vdwg.mxu0
    %v344 = vadd.f32 %v319, %v342
    %v345 = vtanh.pop %v344
    %v347 = vsel %vm156, %v300, 0
    %349 = vmatpush.msra.mxu0 0.0
    %350 = vmatpush.msra.mxu0 0.0
    %351 = vmatpush.msra.mxu0 0.0
    %352 = vmatpush.msra.mxu0 0.0
    %353 = vmatpush.msra.mxu0 0.0
    %354 = vmatpush.msra.mxu0 0.0
    %355 = vmatpush.msra.mxu0 0.0
    %356 = vmatpush.msra.mxu0 0.0
    %357 = vmatpush.msra.mxu0 0.0
    %358 = vmatpush.msra.mxu0 0.0
    %359 = vmatpush.msra.mxu0 0.0
    %360 = vmatpush.msra.mxu0 0.0
    %361 = vmatpush.msra.mxu0 %v71
    %362 = vmatpush.msra.mxu0 %v70
    %363 = vmatpush.msra.mxu0 %v69
    %364 = vmatpush.msra.mxu0 %v68
    %365 = vmatmul.f32.gmra.mxu0 %v347
    %v366 = vpop.f32.mrf.mxu0
    %v367 = vadd.f32 0.0, %v366
    %368 = vdwg.mxu0
    %v369 = vadd.f32 %v144, %v367
    %v370 = vtanh.pop %v369
    %371 = vmatpush.msra.mxu0 0.0
    %372 = vmatpush.msra.mxu0 0.0
    %373 = vmatpush.msra.mxu0 0.0
    %374 = vmatpush.msra.mxu0 0.0
    %375 = vmatpush.msra.mxu0 0.0
    %376 = vmatpush.msra.mxu0 0.0
    %377 = vmatpush.msra.mxu0 0.0
    %378 = vmatpush.msra.mxu0 0.0
    %379 = vmatpush.msra.mxu0 0.0
    %380 = vmatpush.msra.mxu0 0.0
    %381 = vmatpush.msra.mxu0 0.0
    %382 = vmatpush.msra.mxu0 0.0
    %383 = vmatpush.msra.mxu0 %v67
    %384 = vmatpush.msra.mxu0 %v66
    %385 = vmatpush.msra.mxu0 %v65
    %386 = vmatpush.msra.mxu0 %v64
    %387 = vmatmul.f32.gmra.mxu0 %v347
    %v388 = vpop.f32.mrf.mxu0
    %v389 = vadd.f32 %v183, %v388
    %390 = vdwg.mxu0
    %v392 = vsel %vm156, %v345, 0
    %394 = vmatpush.msra.mxu0 0.0
    %395 = vmatpush.msra.mxu0 0.0
    %396 = vmatpush.msra.mxu0 0.0
    %397 = vmatpush.msra.mxu0 0.0
    %398 = vmatpush.msra.mxu0 0.0
    %399 = vmatpush.msra.mxu0 0.0
    %400 = vmatpush.msra.mxu0 0.0
    %401 = vmatpush.msra.mxu0 0.0
    %402 = vmatpush.msra.mxu0 0.0
    %403 = vmatpush.msra.mxu0 0.0
    %404 = vmatpush.msra.mxu0 0.0
    %405 = vmatpush.msra.mxu0 0.0
    %406 = vmatpush.msra.mxu0 %v75
    %407 = vmatpush.msra.mxu0 %v74
    %408 = vmatpush.msra.mxu0 %v73
    %409 = vmatpush.msra.mxu0 %v72
    %410 = vmatmul.f32.gmra.mxu0 %v392
    %v411 = vpop.f32.mrf.mxu0
    %v412 = vadd.f32 0.0, %v411
    %413 = vdwg.mxu0
    %v414 = vadd.f32 %v389, %v412
    %v415 = vtanh.pop %v414
    %v417 = vsel %vm156, %v370, 0
    %419 = vmatpush.msra.mxu0 0.0
    %420 = vmatpush.msra.mxu0 0.0
    %421 = vmatpush.msra.mxu0 0.0
    %422 = vmatpush.msra.mxu0 0.0
    %423 = vmatpush.msra.mxu0 0.0
    %424 = vmatpush.msra.mxu0 0.0
    %425 = vmatpush.msra.mxu0 0.0
    %426 = vmatpush.msra.mxu0 0.0
    %427 = vmatpush.msra.mxu0 0.0
    %428 = vmatpush.msra.mxu0 0.0
    %429 = vmatpush.msra.mxu0 0.0
    %430 = vmatpush.msra.mxu0 0.0
    %431 = vmatpush.msra.mxu0 %v71
    %432 = vmatpush.msra.mxu0 %v70
    %433 = vmatpush.msra.mxu0 %v69
    %434 = vmatpush.msra.mxu0 %v68
    %435 = vmatmul.f32.gmra.mxu0 %v417
    %v436 = vpop.f32.mrf.mxu0
    %v437 = vadd.f32 0.0, %v436
    %438 = vdwg.mxu0
    %v439 = vadd.f32 %v147, %v437
    %v440 = vtanh.pop %v439
    %441 = vmatpush.msra.mxu0 0.0
    %442 = vmatpush.msra.mxu0 0.0
    %443 = vmatpush.msra.mxu0 0.0
    %444 = vmatpush.msra.mxu0 0.0
    %445 = vmatpush.msra.mxu0 0.0
    %446 = vmatpush.msra.mxu0 0.0
    %447 = vmatpush.msra.mxu0 0.0
    %448 = vmatpush.msra.mxu0 0.0
    %449 = vmatpush.msra.mxu0 0.0
    %450 = vmatpush.msra.mxu0 0.0
    %451 = vmatpush.msra.mxu0 0.0
    %452 = vmatpush.msra.mxu0 0.0
    %453 = vmatpush.msra.mxu0 %v67
    %454 = vmatpush.msra.mxu0 %v66
    %455 = vmatpush.msra.mxu0 %v65
    %456 = vmatpush.msra.mxu0 %v64
    %457 = vmatmul.f32.gmra.mxu0 %v417
    %v458 = vpop.f32.mrf.mxu0
    %v459 = vadd.f32 %v183, %v458
    %460 = vdwg.mxu0
    %v462 = vsel %vm156, %v415, 0
    %464 = vmatpush.msra.mxu0 0.0
    %465 = vmatpush.msra.mxu0 0.0
    %466 = vmatpush.msra.mxu0 0.0
    %467 = vmatpush.msra.mxu0 0.0
    %468 = vmatpush.msra.mxu0 0.0
    %469 = vmatpush.msra.mxu0 0.0
    %470 = vmatpush.msra.mxu0 0.0
    %471 = vmatpush.msra.mxu0 0.0
    %472 = vmatpush.msra.mxu0 0.0
    %473 = vmatpush.msra.mxu0 0.0
    %474 = vmatpush.msra.mxu0 0.0
    %475 = vmatpush.msra.mxu0 0.0
    %476 = vmatpush.msra.mxu0 %v75
    %477 = vmatpush.msra.mxu0 %v74
    %478 = vmatpush.msra.mxu0 %v73
    %479 = vmatpush.msra.mxu0 %v72
    %480 = vmatmul.f32.gmra.mxu0 %v462
    %v481 = vpop.f32.mrf.mxu0
    %v482 = vadd.f32 0.0, %v481
    %483 = vdwg.mxu0
    %v484 = vadd.f32 %v459, %v482
    %v485 = vtanh.pop %v484
    %v487 = vsel %vm156, %v440, 0
    %489 = vmatpush.msra.mxu0 0.0
    %490 = vmatpush.msra.mxu0 0.0
    %491 = vmatpush.msra.mxu0 0.0
    %492 = vmatpush.msra.mxu0 0.0
    %493 = vmatpush.msra.mxu0 0.0
    %494 = vmatpush.msra.mxu0 0.0
    %495 = vmatpush.msra.mxu0 0.0
    %496 = vmatpush.msra.mxu0 0.0
    %497 = vmatpush.msra.mxu0 0.0
    %498 = vmatpush.msra.mxu0 0.0
    %499 = vmatpush.msra.mxu0 0.0
    %500 = vmatpush.msra.mxu0 0.0
    %501 = vmatpush.msra.mxu0 %v71
    %502 = vmatpush.msra.mxu0 %v70
    %503 = vmatpush.msra.mxu0 %v69
    %504 = vmatpush.msra.mxu0 %v68
    %505 = vmatmul.f32.gmra.mxu0 %v487
    %v506 = vpop.f32.mrf.mxu0
    %v507 = vadd.f32 0.0, %v506
    %508 = vdwg.mxu0
    %v509 = vadd.f32 %v150, %v507
    %v510 = vtanh.pop %v509
    %511 = vmatpush.msra.mxu0 0.0
    %512 = vmatpush.msra.mxu0 0.0
    %513 = vmatpush.msra.mxu0 0.0
    %514 = vmatpush.msra.mxu0 0.0
    %515 = vmatpush.msra.mxu0 0.0
    %516 = vmatpush.msra.mxu0 0.0
    %517 = vmatpush.msra.mxu0 0.0
    %518 = vmatpush.msra.mxu0 0.0
    %519 = vmatpush.msra.mxu0 0.0
    %520 = vmatpush.msra.mxu0 0.0
    %521 = vmatpush.msra.mxu0 0.0
    %522 = vmatpush.msra.mxu0 0.0
    %523 = vmatpush.msra.mxu0 %v67
    %524 = vmatpush.msra.mxu0 %v66
    %525 = vmatpush.msra.mxu0 %v65
    %526 = vmatpush.msra.mxu0 %v64
    %527 = vmatmul.f32.gmra.mxu0 %v487
    %v528 = vpop.f32.mrf.mxu0
    %v529 = vadd.f32 %v183, %v528
    %530 = vdwg.mxu0
    %v532 = vsel %vm156, %v485, 0
    %534 = vmatpush.msra.mxu0 0.0
    %535 = vmatpush.msra.mxu0 0.0
    %536 = vmatpush.msra.mxu0 0.0
    %537 = vmatpush.msra.mxu0 0.0
    %538 = vmatpush.msra.mxu0 0.0
    %539 = vmatpush.msra.mxu0 0.0
    %540 = vmatpush.msra.mxu0 0.0
    %541 = vmatpush.msra.mxu0 0.0
    %542 = vmatpush.msra.mxu0 0.0
    %543 = vmatpush.msra.mxu0 0.0
    %544 = vmatpush.msra.mxu0 0.0
    %545 = vmatpush.msra.mxu0 0.0
    %546 = vmatpush.msra.mxu0 %v75
    %547 = vmatpush.msra.mxu0 %v74
    %548 = vmatpush.msra.mxu0 %v73
    %549 = vmatpush.msra.mxu0 %v72
    %550 = vmatmul.f32.gmra.mxu0 %v532
    %v551 = vpop.f32.mrf.mxu0
    %v552 = vadd.f32 0.0, %v551
    %553 = vdwg.mxu0
    %v554 = vadd.f32 %v529, %v552
    %v555 = vtanh.pop %v554
    %v557 = vsel %vm156, %v510, 0
    %559 = vmatpush.msra.mxu0 0.0
    %560 = vmatpush.msra.mxu0 0.0
    %561 = vmatpush.msra.mxu0 0.0
    %562 = vmatpush.msra.mxu0 0.0
    %563 = vmatpush.msra.mxu0 0.0
    %564 = vmatpush.msra.mxu0 0.0
    %565 = vmatpush.msra.mxu0 0.0
    %566 = vmatpush.msra.mxu0 0.0
    %567 = vmatpush.msra.mxu0 0.0
    %568 = vmatpush.msra.mxu0 0.0
    %569 = vmatpush.msra.mxu0 0.0
    %570 = vmatpush.msra.mxu0 0.0
    %571 = vmatpush.msra.mxu0 %v71
    %572 = vmatpush.msra.mxu0 %v70
    %573 = vmatpush.msra.mxu0 %v69
    %574 = vmatpush.msra.mxu0 %v68
    %575 = vmatmul.f32.gmra.mxu0 %v557
    %v576 = vpop.f32.mrf.mxu0
    %v577 = vadd.f32 0.0, %v576
    %578 = vdwg.mxu0
    %v579 = vadd.f32 %v153, %v577
    %v580 = vtanh.pop %v579
    %581 = vmatpush.msra.mxu0 0.0
    %582 = vmatpush.msra.mxu0 0.0
    %583 = vmatpush.msra.mxu0 0.0
    %584 = vmatpush.msra.mxu0 0.0
    %585 = vmatpush.msra.mxu0 0.0
    %586 = vmatpush.msra.mxu0 0.0
    %587 = vmatpush.msra.mxu0 0.0
    %588 = vmatpush.msra.mxu0 0.0
    %589 = vmatpush.msra.mxu0 0.0
    %590 = vmatpush.msra.mxu0 0.0
    %591 = vmatpush.msra.mxu0 0.0
    %592 = vmatpush.msra.mxu0 0.0
    %593 = vmatpush.msra.mxu0 %v67
    %594 = vmatpush.msra.mxu0 %v66
    %595 = vmatpush.msra.mxu0 %v65
    %596 = vmatpush.msra.mxu0 %v64
    %597 = vmatmul.f32.gmra.mxu0 %v557
    %v598 = vpop.f32.mrf.mxu0
    %v599 = vadd.f32 %v183, %v598
    %600 = vdwg.mxu0
    %v602 = vsel %vm156, %v555, 0
    %604 = vmatpush.msra.mxu0 0.0
    %605 = vmatpush.msra.mxu0 0.0
    %606 = vmatpush.msra.mxu0 0.0
    %607 = vmatpush.msra.mxu0 0.0
    %608 = vmatpush.msra.mxu0 0.0
    %609 = vmatpush.msra.mxu0 0.0
    %610 = vmatpush.msra.mxu0 0.0
    %611 = vmatpush.msra.mxu0 0.0
    %612 = vmatpush.msra.mxu0 0.0
    %613 = vmatpush.msra.mxu0 0.0
    %614 = vmatpush.msra.mxu0 0.0
    %615 = vmatpush.msra.mxu0 0.0
    %616 = vmatpush.msra.mxu0 %v75
    %617 = vmatpush.msra.mxu0 %v74
    %618 = vmatpush.msra.mxu0 %v73
    %619 = vmatpush.msra.mxu0 %v72
    %620 = vmatmul.f32.gmra.mxu0 %v602
    %v621 = vpop.f32.mrf.mxu0
    %v622 = vadd.f32 0.0, %v621
    %623 = vdwg.mxu0
    %v624 = vadd.f32 %v599, %v622
    %v625 = vtanh.pop %v624
    %v627 = vsel %vm156, %v580, 0
    %629 = vmatpush.msra.mxu0 0.0
    %630 = vmatpush.msra.mxu0 0.0
    %631 = vmatpush.msra.mxu0 0.0
    %632 = vmatpush.msra.mxu0 0.0
    %633 = vmatpush.msra.mxu0 0.0
    %634 = vmatpush.msra.mxu0 0.0
    %635 = vmatpush.msra.mxu0 0.0
    %636 = vmatpush.msra.mxu0 0.0
    %637 = vmatpush.msra.mxu0 0.0
    %638 = vmatpush.msra.mxu0 0.0
    %639 = vmatpush.msra.mxu0 0.0
    %640 = vmatpush.msra.mxu0 0.0
    %641 = vmatpush.msra.mxu0 %v67
    %642 = vmatpush.msra.mxu0 %v66
    %643 = vmatpush.msra.mxu0 %v65
    %644 = vmatpush.msra.mxu0 %v64
    %645 = vmatmul.f32.gmra.mxu0 %v627
    %v646 = vpop.f32.mrf.mxu0
    %v647 = vadd.f32 %v183, %v646
    %648 = vdwg.mxu0
    %v650 = vsel %vm156, %v625, 0
    %652 = vmatpush.msra.mxu0 0.0
    %653 = vmatpush.msra.mxu0 0.0
    %654 = vmatpush.msra.mxu0 0.0
    %655 = vmatpush.msra.mxu0 0.0
    %656 = vmatpush.msra.mxu0 0.0
    %657 = vmatpush.msra.mxu0 0.0
    %658 = vmatpush.msra.mxu0 0.0
    %659 = vmatpush.msra.mxu0 0.0
    %660 = vmatpush.msra.mxu0 0.0
    %661 = vmatpush.msra.mxu0 0.0
    %662 = vmatpush.msra.mxu0 0.0
    %663 = vmatpush.msra.mxu0 0.0
    %664 = vmatpush.msra.mxu0 %v75
    %665 = vmatpush.msra.mxu0 %v74
    %666 = vmatpush.msra.mxu0 %v73
    %667 = vmatpush.msra.mxu0 %v72
    %668 = vmatmul.f32.gmra.mxu0 %v650
    %v669 = vpop.f32.mrf.mxu0
    %v670 = vadd.f32 0.0, %v669
    %671 = vdwg.mxu0
    %v672 = vadd.f32 %v647, %v670
    %v673 = vtanh.pop %v672
    %v674 = vld [vmem:[#allocation2] sm:$0xff]
    %v675 = vld [vmem:[#allocation2 + $0x8] sm:$0xff]
    %v676 = vld [vmem:[#allocation2 + $0x10] sm:$0xff]
    %v677 = vld [vmem:[#allocation2 + $0x18] sm:$0xff]
    %v678 = vld [vmem:[#allocation4] sm:$0x1]
    %v680 = vperm.slane %v678, 0
    %v683 = vsel %vm156, %v673, 0
    %685 = vmatpush.msra.mxu0 0.0
    %686 = vmatpush.msra.mxu0 0.0
    %687 = vmatpush.msra.mxu0 0.0
    %688 = vmatpush.msra.mxu0 0.0
    %689 = vmatpush.msra.mxu0 0.0
    %690 = vmatpush.msra.mxu0 0.0
    %691 = vmatpush.msra.mxu0 0.0
    %692 = vmatpush.msra.mxu0 0.0
    %693 = vmatpush.msra.mxu0 0.0
    %694 = vmatpush.msra.mxu0 0.0
    %695 = vmatpush.msra.mxu0 0.0
    %696 = vmatpush.msra.mxu0 0.0
    %697 = vmatpush.msra.mxu0 %v677
    %698 = vmatpush.msra.mxu0 %v676
    %699 = vmatpush.msra.mxu0 %v675
    %700 = vmatpush.msra.mxu0 %v674
    %701 = vmatmul.f32.gmra.mxu0 %v683
    %v702 = vpop.f32.mrf.mxu0
    %v703 = vadd.f32 %v680, %v702
    %704 = vdwg.mxu0
    %705 = vst [vmem:[%s9] sm:$0xff] %v703
    // Predicated region
    $region46: #{_lambda_.1} parent=1 // pred_check
      _
    $region47: #{_lambda_.1} parent=1 // pred_check_branch
      %707 = sbr.rel (0) target = $region49
    $region48: #{_lambda_.1} parent=1 // pred_region
      _
    $region49: #{_lambda_.1} parent=1 // pred_fallthru
      _
    // Predicated region
    $region50: #{_lambda_.1} parent=1 // pred_check
      _
    $region51: #{_lambda_.1} parent=1 // pred_check_branch
      %709 = sbr.rel (0) target = $region53
    $region52: #{_lambda_.1} parent=1 // pred_region
      _
    $region53: #{_lambda_.1} parent=1 // pred_fallthru
      _
    %710 = vsyncpa [#allocation3], 1
    %711 = vsyncpa [#allocation5], 1

</llo_original>
